<compile_context>
chip_gen: v5e
topology: v5e:2x2
jax: 0.10.0
libtpu: 0.0.40
codegen_flags: <defaults>
</compile_context>

<pallas_src>
import functools

import jax
import jax.numpy as jnp
from jax.experimental import pallas as pl
from jax.experimental.pallas import tpu as pltpu


def _pick_tile_t(T):
    """Largest lane-friendly tile that divides the (padded) T; fall back to full T."""
    for cand in (4096, 2048, 1024, 512, 256, 128):
        if T % cand == 0:
            return cand
    return T


def _nerf_kernel(num_layers,
                 enc_ref, w_up_t_ref, b_up_ref, w_l_t_ref, b_l_ref,
                 w_sum_ref, b_sum_ref, o_ref):
    # enc_ref:    (E, Tt)        MXU dtype (f32 or bf16)
    # w_up_t_ref: (C, E)         b_up_ref: (C, 1)  f32
    # w_l_t_ref:  (L, C, C)      b_l_ref:  (L, C, 1)  f32
    # w_sum_ref:  (1, C)         b_sum_ref: (1, 1) f32
    # o_ref:      (1, Tt)        f32 — T on lanes (lane-dense stores)
    mxu_dt = w_up_t_ref.dtype

    x = enc_ref[...]                                                   # (E, Tt)
    h = jnp.dot(w_up_t_ref[...], x,
                preferred_element_type=jnp.float32) + b_up_ref[...]    # (C, Tt) f32

    # residual layers (small L -> static unroll; weights indexed straight off the refs)
    for i in range(num_layers):
        skip = h
        a = jnp.maximum(h, 0.0).astype(mxu_dt)                         # relu in f32, cast for MXU
        h = jnp.dot(w_l_t_ref[i], a,
                    preferred_element_type=jnp.float32) + b_l_ref[i]
        h = h + skip

    # folded to_samples + channel-sum: one (1,C)x(C,Tt) row matmul
    o_ref[...] = (jnp.dot(w_sum_ref[...], h.astype(mxu_dt),
                          preferred_element_type=jnp.float32) + b_sum_ref[...])


def nerf_forward(encoding, params, *, use_bf16=False):
    """encoding: (batch, encoding_channels, time) -> (batch, 1, time) float32.

    use_bf16=True feeds bf16 operands to the MXU (f32 accumulation); loosen test
    tolerances to ~1e-2 if enabled."""
    w_up, b_up, w_l, b_l, w_out, b_out = params
    B, E, T = encoding.shape
    L, C = w_l.shape[0], w_up.shape[1]

    mxu_dt = jnp.bfloat16 if use_bf16 else jnp.float32

    # Reorient weights once (tiny) so the kernel keeps T on the lane axis.
    w_up_t = jnp.transpose(w_up).astype(mxu_dt)                   # (C, E)
    b_up_c = b_up.reshape(C, 1).astype(jnp.float32)               # (C, 1)
    w_l_t = jnp.transpose(w_l, (0, 2, 1)).astype(mxu_dt)          # (L, C, C)
    b_l_c = b_l.reshape(L, C, 1).astype(jnp.float32)              # (L, C, 1)
    # Fold to_samples + channel sum: sum_c(h @ W + b) == h @ W.sum(1) + b.sum()
    w_sum = jnp.sum(w_out, axis=1).reshape(1, C).astype(mxu_dt)   # (1, C)
    b_sum = jnp.sum(b_out).reshape(1, 1).astype(jnp.float32)      # (1, 1)

    x = encoding.astype(mxu_dt)                                   # (B, E, T) — no transpose

    # Pad time to a multiple of 128 so the output stores stay lane-dense (unmasked vst).
    T_pad = ((T + 127) // 128) * 128
    if T_pad != T:
        x = jnp.pad(x, ((0, 0), (0, 0), (0, T_pad - T)))

    tile_t = _pick_tile_t(T_pad)
    grid = (B, T_pad // tile_t)

    itemsize = 2 if use_bf16 else 4
    flops = 2 * B * T_pad * (E * C + L * C * C + C)
    bytes_accessed = (B * E * T_pad * itemsize + B * T_pad * 4
                      + (w_up_t.size + w_l_t.size + w_sum.size) * itemsize
                      + (b_up_c.size + b_l_c.size + b_sum.size) * 4)
    cost = pl.CostEstimate(flops=flops, transcendentals=0,
                           bytes_accessed=bytes_accessed)

    kernel = functools.partial(_nerf_kernel, L)
    out = pl.pallas_call(
        kernel,
        out_shape=jax.ShapeDtypeStruct((B, 1, T_pad), jnp.float32),
        grid=grid,
        in_specs=[
            # activations: tiled over (batch, time)
            pl.BlockSpec((pl.Squeezed(), E, tile_t), lambda b, t: (b, 0, t)),
            # weights/biases: full arrays, constant index maps -> VMEM-resident
            pl.BlockSpec((C, E), lambda b, t: (0, 0)),
            pl.BlockSpec((C, 1), lambda b, t: (0, 0)),
            pl.BlockSpec((L, C, C), lambda b, t: (0, 0, 0)),
            pl.BlockSpec((L, C, 1), lambda b, t: (0, 0, 0)),
            pl.BlockSpec((1, C), lambda b, t: (0, 0)),
            pl.BlockSpec((1, 1), lambda b, t: (0, 0)),
        ],
        out_specs=pl.BlockSpec((pl.Squeezed(), 1, tile_t), lambda b, t: (b, 0, t)),
        compiler_params=pltpu.CompilerParams(
            dimension_semantics=("parallel", "parallel")),
        cost_estimate=cost,
    )(x, w_up_t, b_up_c, w_l_t, b_l_c, w_sum, b_sum)

    if T_pad != T:
        out = out[:, :, :T]
    return out


def init_params(key, encoding_channels, channels, layers):
    """Deterministic init mirroring the PyTorch module: weights ~ U(-0.05, 0.05), biases 0.

    Weights stored in (in, out) layout; the kernel wrapper reorients them."""
    k_up, k_l, k_out = jax.random.split(key, 3)
    w_up = jax.random.uniform(k_up, (encoding_channels, channels),
                              jnp.float32, -0.05, 0.05)
    b_up = jnp.zeros((channels,), jnp.float32)
    # only l2 of each Layer is used in forward; l1 is dead weight in the PyTorch module
    w_l = jax.random.uniform(k_l, (layers, channels, channels),
                             jnp.float32, -0.05, 0.05)
    b_l = jnp.zeros((layers, channels), jnp.float32)
    w_out = jax.random.uniform(k_out, (channels, 32), jnp.float32, -0.05, 0.05)
    b_out = jnp.zeros((32,), jnp.float32)
    return (w_up, b_up, w_l, b_l, w_out, b_out)


def nerf_reference(encoding, params):
    """Pure-JAX reference matching the PyTorch forward (unfused)."""
    w_up, b_up, w_l, b_l, w_out, b_out = params
    x = jnp.transpose(encoding, (0, 2, 1))            # (B, T, E)
    h = x @ w_up + b_up                               # (B, T, C)
    for i in range(w_l.shape[0]):
        skip = h
        h = jnp.maximum(h, 0.0)
        h = h @ w_l[i] + b_l[i]
        h = h + skip
    y = h @ w_out + b_out                             # (B, T, 32)
    y = jnp.transpose(y, (0, 2, 1))                   # (B, 32, T)
    return jnp.sum(y, axis=1, keepdims=True)          # (B, 1, T)


if __name__ == "__main__":
    batch = 2
    encoding_channels = 16
    channels = 32
    layers = 2
    time = 256   # multiple of 128 -> lane-dense output tiles

    key = jax.random.PRNGKey(0)
    k_in, k_par = jax.random.split(key)
    encoding = jax.random.normal(k_in, (batch, encoding_channels, time), jnp.float32)
    params = init_params(k_par, encoding_channels, channels, layers)

    out = nerf_forward(encoding, params)   # use_bf16=True for v6e/v7x MXU (loosen tol)
    out = jax.block_until_ready(out)

    ref = nerf_reference(encoding, params)
    assert out.shape == (batch, 1, time), out.shape
    assert jnp.allclose(out, ref, atol=1e-5, rtol=1e-5), (out, ref)

    print("KERNEL_OK")
</pallas_src>

<mosaic_0001>
module attributes {stable_mosaic.version = 11 : i64} {
  func.func @_nerf_kernel(%arg0: i32, %arg1: i32, %arg2: memref<1x16x256xf32, #tpu.memory_space<vmem>>, %arg3: memref<32x16xf32, #tpu.memory_space<vmem>>, %arg4: memref<32x1xf32, #tpu.memory_space<vmem>>, %arg5: memref<2x32x32xf32, #tpu.memory_space<vmem>>, %arg6: memref<2x32x1xf32, #tpu.memory_space<vmem>>, %arg7: memref<1x32xf32, #tpu.memory_space<vmem>>, %arg8: memref<1x1xf32, #tpu.memory_space<vmem>>, %arg9: memref<1x1x256xf32, #tpu.memory_space<vmem>>) attributes {dimension_semantics = [#tpu.dimension_semantics<parallel>, #tpu.dimension_semantics<parallel>], iteration_bounds = array<i64: 2, 1>, scalar_prefetch = 0 : i64, scratch_operands = 0 : i64, tpu.core_type = #tpu.core_type<tc>, window_params = [{transform_indices = @transform_0, window_bounds = array<i64: 1, 16, 256>}, {pipeline_mode = #tpu.pipeline_mode<synchronous>, transform_indices = @transform_1, window_bounds = array<i64: 32, 16>}, {pipeline_mode = #tpu.pipeline_mode<synchronous>, transform_indices = @transform_2, window_bounds = array<i64: 32, 1>}, {pipeline_mode = #tpu.pipeline_mode<synchronous>, transform_indices = @transform_3, window_bounds = array<i64: 2, 32, 32>}, {pipeline_mode = #tpu.pipeline_mode<synchronous>, transform_indices = @transform_4, window_bounds = array<i64: 2, 32, 1>}, {pipeline_mode = #tpu.pipeline_mode<synchronous>, transform_indices = @transform_5, window_bounds = array<i64: 1, 32>}, {pipeline_mode = #tpu.pipeline_mode<synchronous>, transform_indices = @transform_6, window_bounds = array<i64: 1, 1>}, {transform_indices = @transform_7, window_bounds = array<i64: 1, 1, 256>}]} {
    %c0 = arith.constant 0 : index
    %c0_0 = arith.constant 0 : index
    %c0_1 = arith.constant 0 : index
    %0 = vector.load %arg2[%c0, %c0_0, %c0_1] : memref<1x16x256xf32, #tpu.memory_space<vmem>>, vector<1x16x256xf32>
    %1 = vector.shape_cast %0 : vector<1x16x256xf32> to vector<16x256xf32>
    %c0_2 = arith.constant 0 : index
    %c0_3 = arith.constant 0 : index
    %2 = vector.load %arg3[%c0_2, %c0_3] : memref<32x16xf32, #tpu.memory_space<vmem>>, vector<32x16xf32>
    %cst = arith.constant dense<0.000000e+00> : vector<32x256xf32>
    %3 = tpu.matmul %2, %1, %cst {dimension_numbers = #tpu.dot_dimension_numbers<[1], [0], [0], [1], [0, 0, 1, 1], [], []>} : vector<32x16xf32>, vector<16x256xf32>, vector<32x256xf32> -> vector<32x256xf32>
    %c0_4 = arith.constant 0 : index
    %c0_5 = arith.constant 0 : index
    %4 = vector.load %arg4[%c0_4, %c0_5] : memref<32x1xf32, #tpu.memory_space<vmem>>, vector<32x1xf32>
    %5 = vector.broadcast %4 : vector<32x1xf32> to vector<32x256xf32>
    %6 = arith.addf %3, %5 : vector<32x256xf32>
    %cst_6 = arith.constant 0.000000e+00 : f32
    %7 = vector.broadcast %cst_6 : f32 to vector<32x256xf32>
    %8 = arith.maximumf %6, %7 : vector<32x256xf32>
    %c0_7 = arith.constant 0 : index
    %c0_8 = arith.constant 0 : index
    %c0_9 = arith.constant 0 : index
    %9 = vector.load %arg5[%c0_7, %c0_8, %c0_9] : memref<2x32x32xf32, #tpu.memory_space<vmem>>, vector<1x32x32xf32>
    %10 = vector.shape_cast %9 : vector<1x32x32xf32> to vector<32x32xf32>
    %cst_10 = arith.constant dense<0.000000e+00> : vector<32x256xf32>
    %11 = tpu.matmul %10, %8, %cst_10 {dimension_numbers = #tpu.dot_dimension_numbers<[1], [0], [0], [1], [0, 0, 1, 1], [], []>} : vector<32x32xf32>, vector<32x256xf32>, vector<32x256xf32> -> vector<32x256xf32>
    %c0_11 = arith.constant 0 : index
    %c0_12 = arith.constant 0 : index
    %c0_13 = arith.constant 0 : index
    %12 = vector.load %arg6[%c0_11, %c0_12, %c0_13] : memref<2x32x1xf32, #tpu.memory_space<vmem>>, vector<1x32x1xf32>
    %13 = vector.shape_cast %12 : vector<1x32x1xf32> to vector<32x1xf32>
    %14 = vector.broadcast %13 : vector<32x1xf32> to vector<32x256xf32>
    %15 = arith.addf %11, %14 : vector<32x256xf32>
    %16 = arith.addf %15, %6 : vector<32x256xf32>
    %cst_14 = arith.constant 0.000000e+00 : f32
    %17 = vector.broadcast %cst_14 : f32 to vector<32x256xf32>
    %18 = arith.maximumf %16, %17 : vector<32x256xf32>
    %c1 = arith.constant 1 : index
    %c0_15 = arith.constant 0 : index
    %c0_16 = arith.constant 0 : index
    %19 = vector.load %arg5[%c1, %c0_15, %c0_16] : memref<2x32x32xf32, #tpu.memory_space<vmem>>, vector<1x32x32xf32>
    %20 = vector.shape_cast %19 : vector<1x32x32xf32> to vector<32x32xf32>
    %cst_17 = arith.constant dense<0.000000e+00> : vector<32x256xf32>
    %21 = tpu.matmul %20, %18, %cst_17 {dimension_numbers = #tpu.dot_dimension_numbers<[1], [0], [0], [1], [0, 0, 1, 1], [], []>} : vector<32x32xf32>, vector<32x256xf32>, vector<32x256xf32> -> vector<32x256xf32>
    %c1_18 = arith.constant 1 : index
    %c0_19 = arith.constant 0 : index
    %c0_20 = arith.constant 0 : index
    %22 = vector.load %arg6[%c1_18, %c0_19, %c0_20] : memref<2x32x1xf32, #tpu.memory_space<vmem>>, vector<1x32x1xf32>
    %23 = vector.shape_cast %22 : vector<1x32x1xf32> to vector<32x1xf32>
    %24 = vector.broadcast %23 : vector<32x1xf32> to vector<32x256xf32>
    %25 = arith.addf %21, %24 : vector<32x256xf32>
    %26 = arith.addf %25, %16 : vector<32x256xf32>
    %c0_21 = arith.constant 0 : index
    %c0_22 = arith.constant 0 : index
    %27 = vector.load %arg7[%c0_21, %c0_22] : memref<1x32xf32, #tpu.memory_space<vmem>>, vector<1x32xf32>
    %cst_23 = arith.constant dense<0.000000e+00> : vector<1x256xf32>
    %28 = tpu.matmul %27, %26, %cst_23 {dimension_numbers = #tpu.dot_dimension_numbers<[1], [0], [0], [1], [0, 0, 1, 1], [], []>} : vector<1x32xf32>, vector<32x256xf32>, vector<1x256xf32> -> vector<1x256xf32>
    %c0_24 = arith.constant 0 : index
    %c0_25 = arith.constant 0 : index
    %29 = vector.load %arg8[%c0_24, %c0_25] : memref<1x1xf32, #tpu.memory_space<vmem>>, vector<1x1xf32>
    %30 = vector.broadcast %29 : vector<1x1xf32> to vector<1x256xf32>
    %31 = arith.addf %28, %30 : vector<1x256xf32>
    %c0_26 = arith.constant 0 : index
    %c0_27 = arith.constant 0 : index
    %c0_28 = arith.constant 0 : index
    %32 = vector.load %arg9[%c0_26, %c0_27, %c0_28] : memref<1x1x256xf32, #tpu.memory_space<vmem>>, vector<1x1x256xf32>
    %33 = vector.shape_cast %32 : vector<1x1x256xf32> to vector<1x256xf32>
    %34 = vector.shape_cast %31 : vector<1x256xf32> to vector<1x1x256xf32>
    tpu.vector_store %arg9[%c0_26, %c0_27, %c0_28], %34 {strides = array<i32>} : memref<1x1x256xf32, #tpu.memory_space<vmem>>, vector<1x1x256xf32>,
    return
  }
  func.func @transform_0(%arg0: i32, %arg1: i32) -> (i32, i32, i32) {
    %c0_i32 = arith.constant 0 : i32
    %c0_i32_0 = arith.constant 0 : i32
    return %arg0, %c0_i32, %arg1 : i32, i32, i32
  }
  func.func @transform_1(%arg0: i32, %arg1: i32) -> (i32, i32) {
    %c0_i32 = arith.constant 0 : i32
    %c0_i32_0 = arith.constant 0 : i32
    %c0_i32_1 = arith.constant 0 : i32
    return %c0_i32, %c0_i32_0 : i32, i32
  }
  func.func @transform_2(%arg0: i32, %arg1: i32) -> (i32, i32) {
    %c0_i32 = arith.constant 0 : i32
    %c0_i32_0 = arith.constant 0 : i32
    %c0_i32_1 = arith.constant 0 : i32
    return %c0_i32, %c0_i32_0 : i32, i32
  }
  func.func @transform_3(%arg0: i32, %arg1: i32) -> (i32, i32, i32) {
    %c0_i32 = arith.constant 0 : i32
    %c0_i32_0 = arith.constant 0 : i32
    %c0_i32_1 = arith.constant 0 : i32
    %c0_i32_2 = arith.constant 0 : i32
    return %c0_i32, %c0_i32_0, %c0_i32_1 : i32, i32, i32
  }
  func.func @transform_4(%arg0: i32, %arg1: i32) -> (i32, i32, i32) {
    %c0_i32 = arith.constant 0 : i32
    %c0_i32_0 = arith.constant 0 : i32
    %c0_i32_1 = arith.constant 0 : i32
    %c0_i32_2 = arith.constant 0 : i32
    return %c0_i32, %c0_i32_0, %c0_i32_1 : i32, i32, i32
  }
  func.func @transform_5(%arg0: i32, %arg1: i32) -> (i32, i32) {
    %c0_i32 = arith.constant 0 : i32
    %c0_i32_0 = arith.constant 0 : i32
    %c0_i32_1 = arith.constant 0 : i32
    return %c0_i32, %c0_i32_0 : i32, i32
  }
  func.func @transform_6(%arg0: i32, %arg1: i32) -> (i32, i32) {
    %c0_i32 = arith.constant 0 : i32
    %c0_i32_0 = arith.constant 0 : i32
    %c0_i32_1 = arith.constant 0 : i32
    return %c0_i32, %c0_i32_0 : i32, i32
  }
  func.func @transform_7(%arg0: i32, %arg1: i32) -> (i32, i32, i32) {
    %c0_i32 = arith.constant 0 : i32
    %c0_i32_0 = arith.constant 0 : i32
    return %arg0, %c0_i32, %arg1 : i32, i32, i32
  }
}

</mosaic_0001>

<llo_original>
// kernel: tpu_custom_call.1
$region0: #{tpu_custom_call.1}
  #allocation0 [shape = 'u32[]', space=smem, size = 0x4, offset = 0x4, fixed_abs, tag = 'smem constant byte address 0x4 - core index']
  #allocation1 [shape = 'u32[72,128]{1,0:T(1,128)}', space=vmem, size = 0x9000, scoped, tag = 'internal scratch']
  #allocation2 [shape = 'f32[1,1]{1,0:T(1,128)S(1)}', space=vmem, size = 0x200, scoped, tag = 'scoped memory for tpu_custom_call.1']
  %s0 = inlined_call_operand.vmem [shape: f32[2,16,256], index: 0, kind: input, shape index: {}]
  %s1 = inlined_call_operand.vmem [shape: f32[32,16], index: 1, kind: input, shape index: {}]
  %s2 = inlined_call_operand.vmem [shape: f32[32,1], index: 2, kind: input, shape index: {}]
  %s3 = inlined_call_operand.vmem [shape: f32[2,32,32], index: 3, kind: input, shape index: {}]
  %s4 = inlined_call_operand.vmem [shape: f32[2,32,1], index: 4, kind: input, shape index: {}]
  %s5 = inlined_call_operand.vmem [shape: f32[1,32], index: 5, kind: input, shape index: {}]
  %s6 = inlined_call_operand.<no memory space> [shape: f32[1,1], index: 6, kind: input, shape index: {}]
  %s7 = inlined_call_operand.hbm [shape: f32[2,1,256], index: 7, kind: output, shape index: {}]
  %s8 = sld [smem:[#allocation0]]
  $region61: #{tpu_custom_call.1} parent=0
    _
  %s10 = ssub.s32 1, %s8
  %s11 = scalar_select 0, %s10, %s8
  %v12 = vstv %s6
  %13 = vst [vmem:[#allocation2] sm:$0x1] %v12
  $region1: #{tpu_custom_call.1} parent=0
    #allocation3 [shape = 'u8[2048]{0}', space=vmem, size = 0x800, scoped, tag = 'output window, operand 0']
    #allocation4 [shape = 's32[2]{0}', space=sflag, size = 0x8, scoped, tag = 'scoped memory for tpu_custom_call.1']
    %14 = vsyncpa [#allocation4], 0
    %s15 = scalar_lea.sflag [#allocation4], 1
    %16 = vsyncpa %s15, 0
    loop: start=0, step=1, limit=4
    $region2: #{tpu_custom_call.1} parent=1 // loop_pre_header
      _
    $region3: #{tpu_custom_call.1} parent=1 // loop_header
      %s18 = sphi 0, %s22
      %p19 = scmp.ge.s32.totalorder %s18, 4
      %s25 = sphi 0, %s37
      %s26 = sphi 0, %s33
      %s27 = sphi 0, %s25
      %s28 = sphi 0, %s26
      %s29 = sphi 0, %s27
      %s30 = sphi 0, %s28
      %s42 = sphi 0, %s44
      %s45 = sphi 0, %s42
      %s46 = sphi 0, %s45
      %s62 = sphi 0, %s46
      %s66 = sphi 0, %s66
      %s68 = sphi 0, %s66
      %s69 = sphi 0, %s68
      %s83 = sphi 0, %s69
      %s87 = sphi 0, %s87
      %s89 = sphi 0, %s87
      %s90 = sphi 0, %s89
      %s104 = sphi 0, %s90
      %s108 = sphi 0, %s108
      %s110 = sphi 0, %s108
      %s111 = sphi 0, %s110
      %s125 = sphi 0, %s111
      %s129 = sphi 0, %s129
      %s131 = sphi 0, %s129
      %s132 = sphi 0, %s131
      %s146 = sphi 0, %s132
      %s150 = sphi 0, %s150
      %s152 = sphi 0, %s150
      %s153 = sphi 0, %s152
      %s167 = sphi 0, %s153
      %s171 = sphi 0, %s171
      %s173 = sphi 0, %s171
      %s174 = sphi 0, %s173
      %s188 = sphi 0, %s174
      %s196 = sphi 0, %s198
      %s199 = sphi 0, %s196
      %s200 = sphi 0, %s199
      %s216 = sphi 0, %s200
    $region4: #{tpu_custom_call.1} parent=1 // loop_header_branch
      %21 = sbr.rel (%p19) target = $region8
    $region5: #{tpu_custom_call.1} parent=1 // loop_body
      %s23 = ssub.s32 %s18, 1
      %s24 = ssub.s32 %s18, 2
      %s31 = sadd.s32 1, %s26
      %p32 = scmp.ge.s32.totalorder %s31, 1
      %s33 = scalar_select %p32, 0, %s31
      %s34 = sadd.s32 1, %s25
      %s35 = scalar_select %p32, %s34, %s25
      %p36 = scmp.ge.s32.totalorder %s35, 2
      %s37 = scalar_select %p36, 0, %s35
      %s38 = ssub.s32 %s25, %s37
      %s39 = ssub.s32 %s26, %s33
      %s40 = sor.u32 %s38, %s39
      %p41 = scmp.eq.s32.totalorder %s40, 0
      %s43 = sadd.s32 %s42, 1
      %s44 = scalar_select %p41, %s42, %s43
      %p47 = pneg %p41
      %p48 = scmp.eq.s32.totalorder %s18, 1
      %p49 = por %p47, %p48
      %p50 = scmp.ne.s32.totalorder %s42, %s45
      %p51 = scmp.eq.s32.totalorder %s18, 0
      %p52 = por %p50, %p51
      %p53 = scmp.ne.s32.totalorder %s42, %s45
      %p54 = scmp.eq.s32.totalorder %s23, 1
      %p55 = por %p53, %p54
      %p56 = scmp.ne.s32.totalorder %s45, %s46
      %p57 = scmp.eq.s32.totalorder %s23, 0
      %p58 = por %p56, %p57
      %p59 = scmp.ne.s32.totalorder %s45, %s46
      %p60 = scmp.eq.s32.totalorder %s24, 1
      %p61 = por %p59, %p60
      %p63 = scmp.ne.s32.totalorder %s46, %s62
      %p64 = scmp.eq.s32.totalorder %s24, 0
      %p65 = por %p63, %p64
      %s67 = sadd.s32 %s66, 1
      %p70 = scmp.eq.s32.totalorder %s18, 1
      %p71 = scmp.ne.s32.totalorder %s66, %s68
      %p72 = scmp.eq.s32.totalorder %s18, 0
      %p73 = por %p71, %p72
      %p74 = scmp.ne.s32.totalorder %s66, %s68
      %p75 = scmp.eq.s32.totalorder %s23, 1
      %p76 = por %p74, %p75
      %p77 = scmp.ne.s32.totalorder %s68, %s69
      %p78 = scmp.eq.s32.totalorder %s23, 0
      %p79 = por %p77, %p78
      %p80 = scmp.ne.s32.totalorder %s68, %s69
      %p81 = scmp.eq.s32.totalorder %s24, 1
      %p82 = por %p80, %p81
      %p84 = scmp.ne.s32.totalorder %s69, %s83
      %p85 = scmp.eq.s32.totalorder %s24, 0
      %p86 = por %p84, %p85
      %s88 = sadd.s32 %s87, 1
      %p91 = scmp.eq.s32.totalorder %s18, 1
      %p92 = scmp.ne.s32.totalorder %s87, %s89
      %p93 = scmp.eq.s32.totalorder %s18, 0
      %p94 = por %p92, %p93
      %p95 = scmp.ne.s32.totalorder %s87, %s89
      %p96 = scmp.eq.s32.totalorder %s23, 1
      %p97 = por %p95, %p96
      %p98 = scmp.ne.s32.totalorder %s89, %s90
      %p99 = scmp.eq.s32.totalorder %s23, 0
      %p100 = por %p98, %p99
      %p101 = scmp.ne.s32.totalorder %s89, %s90
      %p102 = scmp.eq.s32.totalorder %s24, 1
      %p103 = por %p101, %p102
      %p105 = scmp.ne.s32.totalorder %s90, %s104
      %p106 = scmp.eq.s32.totalorder %s24, 0
      %p107 = por %p105, %p106
      %s109 = sadd.s32 %s108, 1
      %p112 = scmp.eq.s32.totalorder %s18, 1
      %p113 = scmp.ne.s32.totalorder %s108, %s110
      %p114 = scmp.eq.s32.totalorder %s18, 0
      %p115 = por %p113, %p114
      %p116 = scmp.ne.s32.totalorder %s108, %s110
      %p117 = scmp.eq.s32.totalorder %s23, 1
      %p118 = por %p116, %p117
      %p119 = scmp.ne.s32.totalorder %s110, %s111
      %p120 = scmp.eq.s32.totalorder %s23, 0
      %p121 = por %p119, %p120
      %p122 = scmp.ne.s32.totalorder %s110, %s111
      %p123 = scmp.eq.s32.totalorder %s24, 1
      %p124 = por %p122, %p123
      %p126 = scmp.ne.s32.totalorder %s111, %s125
      %p127 = scmp.eq.s32.totalorder %s24, 0
      %p128 = por %p126, %p127
      %s130 = sadd.s32 %s129, 1
      %p133 = scmp.eq.s32.totalorder %s18, 1
      %p134 = scmp.ne.s32.totalorder %s129, %s131
      %p135 = scmp.eq.s32.totalorder %s18, 0
      %p136 = por %p134, %p135
      %p137 = scmp.ne.s32.totalorder %s129, %s131
      %p138 = scmp.eq.s32.totalorder %s23, 1
      %p139 = por %p137, %p138
      %p140 = scmp.ne.s32.totalorder %s131, %s132
      %p141 = scmp.eq.s32.totalorder %s23, 0
      %p142 = por %p140, %p141
      %p143 = scmp.ne.s32.totalorder %s131, %s132
      %p144 = scmp.eq.s32.totalorder %s24, 1
      %p145 = por %p143, %p144
      %p147 = scmp.ne.s32.totalorder %s132, %s146
      %p148 = scmp.eq.s32.totalorder %s24, 0
      %p149 = por %p147, %p148
      %s151 = sadd.s32 %s150, 1
      %p154 = scmp.eq.s32.totalorder %s18, 1
      %p155 = scmp.ne.s32.totalorder %s150, %s152
      %p156 = scmp.eq.s32.totalorder %s18, 0
      %p157 = por %p155, %p156
      %p158 = scmp.ne.s32.totalorder %s150, %s152
      %p159 = scmp.eq.s32.totalorder %s23, 1
      %p160 = por %p158, %p159
      %p161 = scmp.ne.s32.totalorder %s152, %s153
      %p162 = scmp.eq.s32.totalorder %s23, 0
      %p163 = por %p161, %p162
      %p164 = scmp.ne.s32.totalorder %s152, %s153
      %p165 = scmp.eq.s32.totalorder %s24, 1
      %p166 = por %p164, %p165
      %p168 = scmp.ne.s32.totalorder %s153, %s167
      %p169 = scmp.eq.s32.totalorder %s24, 0
      %p170 = por %p168, %p169
      %s172 = sadd.s32 %s171, 1
      %p175 = scmp.eq.s32.totalorder %s18, 1
      %p176 = scmp.ne.s32.totalorder %s171, %s173
      %p177 = scmp.eq.s32.totalorder %s18, 0
      %p178 = por %p176, %p177
      %p179 = scmp.ne.s32.totalorder %s171, %s173
      %p180 = scmp.eq.s32.totalorder %s23, 1
      %p181 = por %p179, %p180
      %p182 = scmp.ne.s32.totalorder %s173, %s174
      %p183 = scmp.eq.s32.totalorder %s23, 0
      %p184 = por %p182, %p183
      %p185 = scmp.ne.s32.totalorder %s173, %s174
      %p186 = scmp.eq.s32.totalorder %s24, 1
      %p187 = por %p185, %p186
      %p189 = scmp.ne.s32.totalorder %s174, %s188
      %p190 = scmp.eq.s32.totalorder %s24, 0
      %p191 = por %p189, %p190
      %s192 = ssub.s32 %s25, %s37
      %s193 = ssub.s32 %s26, %s33
      %s194 = sor.u32 %s192, %s193
      %p195 = scmp.eq.s32.totalorder %s194, 0
      %s197 = sadd.s32 %s196, 1
      %s198 = scalar_select %p195, %s196, %s197
      %p201 = pneg %p195
      %p202 = scmp.eq.s32.totalorder %s18, 1
      %p203 = por %p201, %p202
      %p204 = scmp.ne.s32.totalorder %s196, %s199
      %p205 = scmp.eq.s32.totalorder %s18, 0
      %p206 = por %p204, %p205
      %p207 = scmp.ne.s32.totalorder %s196, %s199
      %p208 = scmp.eq.s32.totalorder %s23, 1
      %p209 = por %p207, %p208
      %p210 = scmp.ne.s32.totalorder %s199, %s200
      %p211 = scmp.eq.s32.totalorder %s23, 0
      %p212 = por %p210, %p211
      %p213 = scmp.ne.s32.totalorder %s199, %s200
      %p214 = scmp.eq.s32.totalorder %s24, 1
      %p215 = por %p213, %p214
      %p217 = scmp.ne.s32.totalorder %s200, %s216
      %p218 = scmp.eq.s32.totalorder %s24, 0
      %p219 = por %p217, %p218
      %p220 = scmp.le.s32.totalorder 1, %s18
      %p221 = scmp.lt.s32.totalorder %s18, 3
      %p222 = pnand %p220, %p221
      %p223 = pneg %p222
      // Predicated region
      $region9: #{tpu_custom_call.1} parent=5 // pred_check
        _
      $region10: #{tpu_custom_call.1} parent=5 // pred_check_branch
        %225 = sbr.rel (%p222) target = $region12
      $region11: #{tpu_custom_call.1} parent=5 // pred_region
        %s226 = ssub.s32 %s18, 1
        // Predicated region
        $region13: #{tpu_custom_call.1} parent=11 // pred_check
          %p227 = pneg %p79
        $region14: #{tpu_custom_call.1} parent=11 // pred_check_branch
          %229 = sbr.rel (%p227) target = $region16
        $region15: #{tpu_custom_call.1} parent=11 // pred_region
          _
        $region16: #{tpu_custom_call.1} parent=11 // pred_fallthru
          _
        // Predicated region
        $region17: #{tpu_custom_call.1} parent=11 // pred_check
          %p230 = pneg %p100
        $region18: #{tpu_custom_call.1} parent=11 // pred_check_branch
          %232 = sbr.rel (%p230) target = $region20
        $region19: #{tpu_custom_call.1} parent=11 // pred_region
          _
        $region20: #{tpu_custom_call.1} parent=11 // pred_fallthru
          _
        // Predicated region
        $region21: #{tpu_custom_call.1} parent=11 // pred_check
          %p233 = pneg %p121
        $region22: #{tpu_custom_call.1} parent=11 // pred_check_branch
          %235 = sbr.rel (%p233) target = $region24
        $region23: #{tpu_custom_call.1} parent=11 // pred_region
          _
        $region24: #{tpu_custom_call.1} parent=11 // pred_fallthru
          _
        // Predicated region
        $region25: #{tpu_custom_call.1} parent=11 // pred_check
          %p236 = pneg %p142
        $region26: #{tpu_custom_call.1} parent=11 // pred_check_branch
          %238 = sbr.rel (%p236) target = $region28
        $region27: #{tpu_custom_call.1} parent=11 // pred_region
          _
        $region28: #{tpu_custom_call.1} parent=11 // pred_fallthru
          _
        // Predicated region
        $region29: #{tpu_custom_call.1} parent=11 // pred_check
          %p239 = pneg %p163
        $region30: #{tpu_custom_call.1} parent=11 // pred_check_branch
          %241 = sbr.rel (%p239) target = $region32
        $region31: #{tpu_custom_call.1} parent=11 // pred_region
          _
        $region32: #{tpu_custom_call.1} parent=11 // pred_fallthru
          _
        // Predicated region
        $region33: #{tpu_custom_call.1} parent=11 // pred_check
          %p242 = pneg %p184
        $region34: #{tpu_custom_call.1} parent=11 // pred_check_branch
          %244 = sbr.rel (%p242) target = $region36
        $region35: #{tpu_custom_call.1} parent=11 // pred_region
          _
        $region36: #{tpu_custom_call.1} parent=11 // pred_fallthru
          _
      $region12: #{tpu_custom_call.1} parent=5 // pred_fallthru
        _
      %p245 = scmp.lt.s32.totalorder %s18, 2
      // Predicated region
      $region37: #{tpu_custom_call.1} parent=5 // pred_check
        %p246 = pneg %p245
      $region38: #{tpu_custom_call.1} parent=5 // pred_check_branch
        %248 = sbr.rel (%p246) target = $region40
      $region39: #{tpu_custom_call.1} parent=5 // pred_region
        // Predicated region
        $region41: #{tpu_custom_call.1} parent=39 // pred_check
          %p249 = pneg %p52
        $region42: #{tpu_custom_call.1} parent=39 // pred_check_branch
          %251 = sbr.rel (%p249) target = $region44
        $region43: #{tpu_custom_call.1} parent=39 // pred_region
          %s252 = smul.u32 2, %s26
          %p253 = scmp.lt.s32.totalorder %s25, 1
          %s254 = scalar_select %p253, %s25, 1
          %p255 = scmp.lt.s32.totalorder %s252, 1
          %s256 = scalar_select %p255, %s252, 1
          %s257 = smul.addr %s254, 4
          %s258 = sadd.s32 %s256, %s257
          %s259 = smul.addr %s258, 8
          %s260 = scalar_lea.vmem %s0, %s259
          %s261 = smul.u32 2, %s26
        $region44: #{tpu_custom_call.1} parent=39 // pred_fallthru
          _
      $region40: #{tpu_custom_call.1} parent=5 // pred_fallthru
        _
      %p262 = scmp.le.s32.totalorder 1, %s18
      %p263 = scmp.lt.s32.totalorder %s18, 3
      %p264 = pnand %p262, %p263
      %p265 = pneg %p264
      // Predicated region
      $region45: #{tpu_custom_call.1} parent=5 // pred_check
        _
      $region46: #{tpu_custom_call.1} parent=5 // pred_check_branch
        %267 = sbr.rel (%p264) target = $region48
      $region47: #{tpu_custom_call.1} parent=5 // pred_region
        %s268 = ssub.s32 %s18, 1
        %s269 = smul.u32 2, %s28
        %p270 = scmp.lt.s32.totalorder %s27, 1
        %s271 = scalar_select %p270, %s27, 1
        %p272 = scmp.lt.s32.totalorder %s269, 1
        %s273 = scalar_select %p272, %s269, 1
        %s274 = smul.addr %s271, 4
        %s275 = sadd.s32 %s273, %s274
        %s276 = smul.addr %s275, 8
        %s277 = scalar_lea.vmem %s0, %s276
        %p278 = pneg %p58
        %p279 = pneg %p55
        %p280 = pneg %p79
        %p281 = pneg %p76
        %p282 = pneg %p100
        %p283 = pneg %p97
        %p284 = pneg %p121
        %p285 = pneg %p118
        %p286 = pneg %p142
        %p287 = pneg %p139
        %p288 = pneg %p163
        %p289 = pneg %p160
        %p290 = pneg %p184
        %p291 = pneg %p181
        %p292 = pneg %p212
        %p293 = pneg %p209
        %s294 = sand.u32 %s199, 1
        %s295 = scalar_lea.sflag [#allocation4], %s294
        %s296 = sand.u32 %s199, 1
        %s297 = smul.addr %s296, 2
        %s298 = scalar_lea.vmem [#allocation3], %s297
        %s299 = smul.u32 2, %s28
        %p300 = scmp.lt.s32.totalorder %s27, 1
        %s301 = scalar_select %p300, %s27, 1
        %p302 = scmp.lt.s32.totalorder %s299, 1
        %s303 = scalar_select %p302, %s299, 1
        %s304 = smul.addr %s301, 4
        %s305 = sadd.s32 %s303, %s304
        %s306 = smul.addr %s305, 8
        %s307 = scalar_lea.vmem %s0, %s306
        %s308 = smul.u32 2, %s28
        %s309 = smul.u32 2, %s28
        %v310 = vld [vmem:[%s307] sm:$0xff]
        %v311 = vld [vmem:[%s307 + $0x8] sm:$0xff]
        %v312 = vld [vmem:[%s307 + $0x10] sm:$0xff]
        %v313 = vld [vmem:[%s307 + $0x18] sm:$0xff]
        %v314 = vld [vmem:[%s1] sm:$0xff]
        %v315 = vld [vmem:[%s1 + $0x8] sm:$0xff]
        %v316 = vld [vmem:[%s1 + $0x10] sm:$0xff]
        %v317 = vld [vmem:[%s1 + $0x18] sm:$0xff]
        %v318 = vld [vmem:[%s2] sm:$0xff]
        %v319 = vld [vmem:[%s2 + $0x8] sm:$0xff]
        %v320 = vld [vmem:[%s2 + $0x10] sm:$0xff]
        %v321 = vld [vmem:[%s2 + $0x18] sm:$0xff]
        %323 = vset.pattern.permute.xlu0 0
        %324 = vperm.xlu0 %323, %v318
        %v325 = vpop.permute.xlu0 %324
        %328 = vset.pattern.permute.xlu0 0
        %329 = vperm.xlu0 %328, %v319
        %v330 = vpop.permute.xlu0 %329
        %333 = vset.pattern.permute.xlu0 0
        %334 = vperm.xlu0 %333, %v320
        %v335 = vpop.permute.xlu0 %334
        %338 = vset.pattern.permute.xlu0 0
        %339 = vperm.xlu0 %338, %v321
        %v340 = vpop.permute.xlu0 %339
        %vm342 = vcmask 130048
        %v344 = vsel %vm342, %v314, 0
        %v347 = vsel %vm342, %v315, 0
        %v350 = vsel %vm342, %v316, 0
        %v353 = vsel %vm342, %v317, 0
        %355 = vmatpush.msra.mxu0 0.0
        %356 = vmatpush.msra.mxu0 0.0
        %357 = vmatpush.msra.mxu0 0.0
        %358 = vmatpush.msra.mxu0 0.0
        %359 = vmatpush.msra.mxu0 0.0
        %360 = vmatpush.msra.mxu0 0.0
        %361 = vmatpush.msra.mxu0 0.0
        %362 = vmatpush.msra.mxu0 0.0
        %363 = vmatpush.msra.mxu0 0.0
        %364 = vmatpush.msra.mxu0 0.0
        %365 = vmatpush.msra.mxu0 0.0
        %366 = vmatpush.msra.mxu0 0.0
        %367 = vmatpush.msra.mxu0 0.0
        %368 = vmatpush.msra.mxu0 0.0
        %369 = vmatpush.msra.mxu0 %v312
        %370 = vmatpush.msra.mxu0 %v310
        %371 = vmatmul.f32.gmra.mxu0 %v344
        %v372 = vpop.f32.mrf.mxu0
        %v373 = vadd.f32 %v325, %v372
        %374 = vmatmul.f32.gmra.mxu0 %v347
        %v375 = vpop.f32.mrf.mxu0
        %v376 = vadd.f32 %v330, %v375
        %377 = vmatmul.f32.gmra.mxu0 %v350
        %v378 = vpop.f32.mrf.mxu0
        %v379 = vadd.f32 %v335, %v378
        %380 = vmatmul.f32.gmra.mxu0 %v353
        %v381 = vpop.f32.mrf.mxu0
        %v382 = vadd.f32 %v340, %v381
        %383 = vdwg.mxu0
        %384 = vmatpush.msra.mxu0 0.0
        %385 = vmatpush.msra.mxu0 0.0
        %386 = vmatpush.msra.mxu0 0.0
        %387 = vmatpush.msra.mxu0 0.0
        %388 = vmatpush.msra.mxu0 0.0
        %389 = vmatpush.msra.mxu0 0.0
        %390 = vmatpush.msra.mxu0 0.0
        %391 = vmatpush.msra.mxu0 0.0
        %392 = vmatpush.msra.mxu0 0.0
        %393 = vmatpush.msra.mxu0 0.0
        %394 = vmatpush.msra.mxu0 0.0
        %395 = vmatpush.msra.mxu0 0.0
        %396 = vmatpush.msra.mxu0 0.0
        %397 = vmatpush.msra.mxu0 0.0
        %398 = vmatpush.msra.mxu0 %v313
        %399 = vmatpush.msra.mxu0 %v311
        %400 = vmatmul.f32.gmra.mxu0 %v344
        %v401 = vpop.f32.mrf.mxu0
        %v402 = vadd.f32 %v325, %v401
        %403 = vmatmul.f32.gmra.mxu0 %v347
        %v404 = vpop.f32.mrf.mxu0
        %v405 = vadd.f32 %v330, %v404
        %406 = vmatmul.f32.gmra.mxu0 %v350
        %v407 = vpop.f32.mrf.mxu0
        %v408 = vadd.f32 %v335, %v407
        %409 = vmatmul.f32.gmra.mxu0 %v353
        %v410 = vpop.f32.mrf.mxu0
        %v411 = vadd.f32 %v340, %v410
        %412 = vdwg.mxu0
        %v413 = vmax.f32 %v373, 0.0
        %v414 = vmax.f32 %v402, 0.0
        %v415 = vmax.f32 %v376, 0.0
        %v416 = vmax.f32 %v405, 0.0
        %v417 = vmax.f32 %v379, 0.0
        %v418 = vmax.f32 %v408, 0.0
        %v419 = vmax.f32 %v382, 0.0
        %v420 = vmax.f32 %v411, 0.0
        %v421 = vld [vmem:[%s3] sm:$0xff]
        %v422 = vld [vmem:[%s3 + $0x8] sm:$0xff]
        %v423 = vld [vmem:[%s3 + $0x10] sm:$0xff]
        %v424 = vld [vmem:[%s3 + $0x18] sm:$0xff]
        %v425 = vld [vmem:[%s4] sm:$0xff]
        %v426 = vld [vmem:[%s4 + $0x8] sm:$0xff]
        %v427 = vld [vmem:[%s4 + $0x10] sm:$0xff]
        %v428 = vld [vmem:[%s4 + $0x18] sm:$0xff]
        %430 = vset.pattern.permute.xlu0 0
        %431 = vperm.xlu0 %430, %v425
        %v432 = vpop.permute.xlu0 %431
        %435 = vset.pattern.permute.xlu0 0
        %436 = vperm.xlu0 %435, %v426
        %v437 = vpop.permute.xlu0 %436
        %440 = vset.pattern.permute.xlu0 0
        %441 = vperm.xlu0 %440, %v427
        %v442 = vpop.permute.xlu0 %441
        %445 = vset.pattern.permute.xlu0 0
        %446 = vperm.xlu0 %445, %v428
        %v447 = vpop.permute.xlu0 %446
        %vm449 = vcmask 261120
        %v451 = vsel %vm449, %v421, 0
        %v454 = vsel %vm449, %v422, 0
        %v457 = vsel %vm449, %v423, 0
        %v460 = vsel %vm449, %v424, 0
        %462 = vmatpush.msra.mxu0 0.0
        %463 = vmatpush.msra.mxu0 0.0
        %464 = vmatpush.msra.mxu0 0.0
        %465 = vmatpush.msra.mxu0 0.0
        %466 = vmatpush.msra.mxu0 0.0
        %467 = vmatpush.msra.mxu0 0.0
        %468 = vmatpush.msra.mxu0 0.0
        %469 = vmatpush.msra.mxu0 0.0
        %470 = vmatpush.msra.mxu0 0.0
        %471 = vmatpush.msra.mxu0 0.0
        %472 = vmatpush.msra.mxu0 0.0
        %473 = vmatpush.msra.mxu0 0.0
        %474 = vmatpush.msra.mxu0 %v419
        %475 = vmatpush.msra.mxu0 %v417
        %476 = vmatpush.msra.mxu0 %v415
        %477 = vmatpush.msra.mxu0 %v413
        %478 = vmatmul.f32.gmra.mxu0 %v451
        %v479 = vpop.f32.mrf.mxu0
        %v480 = vadd.f32 %v432, %v479
        %481 = vmatmul.f32.gmra.mxu0 %v454
        %v482 = vpop.f32.mrf.mxu0
        %v483 = vadd.f32 %v437, %v482
        %484 = vmatmul.f32.gmra.mxu0 %v457
        %v485 = vpop.f32.mrf.mxu0
        %v486 = vadd.f32 %v442, %v485
        %487 = vmatmul.f32.gmra.mxu0 %v460
        %v488 = vpop.f32.mrf.mxu0
        %v489 = vadd.f32 %v447, %v488
        %490 = vdwg.mxu0
        %491 = vmatpush.msra.mxu0 0.0
        %492 = vmatpush.msra.mxu0 0.0
        %493 = vmatpush.msra.mxu0 0.0
        %494 = vmatpush.msra.mxu0 0.0
        %495 = vmatpush.msra.mxu0 0.0
        %496 = vmatpush.msra.mxu0 0.0
        %497 = vmatpush.msra.mxu0 0.0
        %498 = vmatpush.msra.mxu0 0.0
        %499 = vmatpush.msra.mxu0 0.0
        %500 = vmatpush.msra.mxu0 0.0
        %501 = vmatpush.msra.mxu0 0.0
        %502 = vmatpush.msra.mxu0 0.0
        %503 = vmatpush.msra.mxu0 %v420
        %504 = vmatpush.msra.mxu0 %v418
        %505 = vmatpush.msra.mxu0 %v416
        %506 = vmatpush.msra.mxu0 %v414
        %507 = vmatmul.f32.gmra.mxu0 %v451
        %v508 = vpop.f32.mrf.mxu0
        %v509 = vadd.f32 %v432, %v508
        %510 = vmatmul.f32.gmra.mxu0 %v454
        %v511 = vpop.f32.mrf.mxu0
        %v512 = vadd.f32 %v437, %v511
        %513 = vmatmul.f32.gmra.mxu0 %v457
        %v514 = vpop.f32.mrf.mxu0
        %v515 = vadd.f32 %v442, %v514
        %516 = vmatmul.f32.gmra.mxu0 %v460
        %v517 = vpop.f32.mrf.mxu0
        %v518 = vadd.f32 %v447, %v517
        %519 = vdwg.mxu0
        %v520 = vadd.f32 %v480, %v373
        %v521 = vadd.f32 %v509, %v402
        %v522 = vadd.f32 %v483, %v376
        %v523 = vadd.f32 %v512, %v405
        %v524 = vadd.f32 %v486, %v379
        %v525 = vadd.f32 %v515, %v408
        %v526 = vadd.f32 %v489, %v382
        %v527 = vadd.f32 %v518, %v411
        %v528 = vmax.f32 %v520, 0.0
        %v529 = vmax.f32 %v521, 0.0
        %v530 = vmax.f32 %v522, 0.0
        %v531 = vmax.f32 %v523, 0.0
        %v532 = vmax.f32 %v524, 0.0
        %v533 = vmax.f32 %v525, 0.0
        %v534 = vmax.f32 %v526, 0.0
        %v535 = vmax.f32 %v527, 0.0
        %s536 = scalar_lea.vmem %s3, 32
        %v537 = vld [vmem:[%s536] sm:$0xff]
        %v538 = vld [vmem:[%s536 + $0x8] sm:$0xff]
        %v539 = vld [vmem:[%s536 + $0x10] sm:$0xff]
        %v540 = vld [vmem:[%s536 + $0x18] sm:$0xff]
        %s541 = scalar_lea.vmem %s4, 32
        %v542 = vld [vmem:[%s541] sm:$0xff]
        %v543 = vld [vmem:[%s541 + $0x8] sm:$0xff]
        %v544 = vld [vmem:[%s541 + $0x10] sm:$0xff]
        %v545 = vld [vmem:[%s541 + $0x18] sm:$0xff]
        %547 = vset.pattern.permute.xlu0 0
        %548 = vperm.xlu0 %547, %v542
        %v549 = vpop.permute.xlu0 %548
        %552 = vset.pattern.permute.xlu0 0
        %553 = vperm.xlu0 %552, %v543
        %v554 = vpop.permute.xlu0 %553
        %557 = vset.pattern.permute.xlu0 0
        %558 = vperm.xlu0 %557, %v544
        %v559 = vpop.permute.xlu0 %558
        %562 = vset.pattern.permute.xlu0 0
        %563 = vperm.xlu0 %562, %v545
        %v564 = vpop.permute.xlu0 %563
        %v567 = vsel %vm449, %v537, 0
        %v570 = vsel %vm449, %v538, 0
        %v573 = vsel %vm449, %v539, 0
        %v576 = vsel %vm449, %v540, 0
        %578 = vmatpush.msra.mxu0 0.0
        %579 = vmatpush.msra.mxu0 0.0
        %580 = vmatpush.msra.mxu0 0.0
        %581 = vmatpush.msra.mxu0 0.0
        %582 = vmatpush.msra.mxu0 0.0
        %583 = vmatpush.msra.mxu0 0.0
        %584 = vmatpush.msra.mxu0 0.0
        %585 = vmatpush.msra.mxu0 0.0
        %586 = vmatpush.msra.mxu0 0.0
        %587 = vmatpush.msra.mxu0 0.0
        %588 = vmatpush.msra.mxu0 0.0
        %589 = vmatpush.msra.mxu0 0.0
        %590 = vmatpush.msra.mxu0 %v534
        %591 = vmatpush.msra.mxu0 %v532
        %592 = vmatpush.msra.mxu0 %v530
        %593 = vmatpush.msra.mxu0 %v528
        %594 = vmatmul.f32.gmra.mxu0 %v567
        %v595 = vpop.f32.mrf.mxu0
        %v596 = vadd.f32 %v549, %v595
        %597 = vmatmul.f32.gmra.mxu0 %v570
        %v598 = vpop.f32.mrf.mxu0
        %v599 = vadd.f32 %v554, %v598
        %600 = vmatmul.f32.gmra.mxu0 %v573
        %v601 = vpop.f32.mrf.mxu0
        %v602 = vadd.f32 %v559, %v601
        %603 = vmatmul.f32.gmra.mxu0 %v576
        %v604 = vpop.f32.mrf.mxu0
        %v605 = vadd.f32 %v564, %v604
        %606 = vdwg.mxu0
        %607 = vmatpush.msra.mxu0 0.0
        %608 = vmatpush.msra.mxu0 0.0
        %609 = vmatpush.msra.mxu0 0.0
        %610 = vmatpush.msra.mxu0 0.0
        %611 = vmatpush.msra.mxu0 0.0
        %612 = vmatpush.msra.mxu0 0.0
        %613 = vmatpush.msra.mxu0 0.0
        %614 = vmatpush.msra.mxu0 0.0
        %615 = vmatpush.msra.mxu0 0.0
        %616 = vmatpush.msra.mxu0 0.0
        %617 = vmatpush.msra.mxu0 0.0
        %618 = vmatpush.msra.mxu0 0.0
        %619 = vmatpush.msra.mxu0 %v535
        %620 = vmatpush.msra.mxu0 %v533
        %621 = vmatpush.msra.mxu0 %v531
        %622 = vmatpush.msra.mxu0 %v529
        %623 = vmatmul.f32.gmra.mxu0 %v567
        %v624 = vpop.f32.mrf.mxu0
        %v625 = vadd.f32 %v549, %v624
        %626 = vmatmul.f32.gmra.mxu0 %v570
        %v627 = vpop.f32.mrf.mxu0
        %v628 = vadd.f32 %v554, %v627
        %629 = vmatmul.f32.gmra.mxu0 %v573
        %v630 = vpop.f32.mrf.mxu0
        %v631 = vadd.f32 %v559, %v630
        %632 = vmatmul.f32.gmra.mxu0 %v576
        %v633 = vpop.f32.mrf.mxu0
        %v634 = vadd.f32 %v564, %v633
        %635 = vdwg.mxu0
        %v636 = vadd.f32 %v596, %v520
        %v637 = vadd.f32 %v625, %v521
        %v638 = vadd.f32 %v599, %v522
        %v639 = vadd.f32 %v628, %v523
        %v640 = vadd.f32 %v602, %v524
        %v641 = vadd.f32 %v631, %v525
        %v642 = vadd.f32 %v605, %v526
        %v643 = vadd.f32 %v634, %v527
        %v644 = vld [vmem:[%s5] sm:$0x1]
        %v645 = vld [vmem:[#allocation2] sm:$0x1]
        %647 = vset.pattern.permute.xlu0 0
        %648 = vperm.xlu0 %647, %v645
        %v649 = vpop.permute.xlu0 %648
        %v651 = vperm.slane %v649, 0
        %v653 = vsel %vm449, %v644, 0
        %655 = vmatpush.msra.mxu0 0.0
        %656 = vmatpush.msra.mxu0 0.0
        %657 = vmatpush.msra.mxu0 0.0
        %658 = vmatpush.msra.mxu0 0.0
        %659 = vmatpush.msra.mxu0 0.0
        %660 = vmatpush.msra.mxu0 0.0
        %661 = vmatpush.msra.mxu0 0.0
        %662 = vmatpush.msra.mxu0 0.0
        %663 = vmatpush.msra.mxu0 0.0
        %664 = vmatpush.msra.mxu0 0.0
        %665 = vmatpush.msra.mxu0 0.0
        %666 = vmatpush.msra.mxu0 0.0
        %667 = vmatpush.msra.mxu0 %v642
        %668 = vmatpush.msra.mxu0 %v640
        %669 = vmatpush.msra.mxu0 %v638
        %670 = vmatpush.msra.mxu0 %v636
        %671 = vmatmul.f32.gmra.mxu0 %v653
        %v672 = vpop.f32.mrf.mxu0
        %v673 = vadd.f32 %v651, %v672
        %674 = vdwg.mxu0
        %675 = vmatpush.msra.mxu0 0.0
        %676 = vmatpush.msra.mxu0 0.0
        %677 = vmatpush.msra.mxu0 0.0
        %678 = vmatpush.msra.mxu0 0.0
        %679 = vmatpush.msra.mxu0 0.0
        %680 = vmatpush.msra.mxu0 0.0
        %681 = vmatpush.msra.mxu0 0.0
        %682 = vmatpush.msra.mxu0 0.0
        %683 = vmatpush.msra.mxu0 0.0
        %684 = vmatpush.msra.mxu0 0.0
        %685 = vmatpush.msra.mxu0 0.0
        %686 = vmatpush.msra.mxu0 0.0
        %687 = vmatpush.msra.mxu0 %v643
        %688 = vmatpush.msra.mxu0 %v641
        %689 = vmatpush.msra.mxu0 %v639
        %690 = vmatpush.msra.mxu0 %v637
        %691 = vmatmul.f32.gmra.mxu0 %v653
        %v692 = vpop.f32.mrf.mxu0
        %v693 = vadd.f32 %v651, %v692
        %694 = vdwg.mxu0
        %v697 = vrot.slane %v693, 7
        %vm698 = vcmask 1040384
        %v699 = vsel %vm698, %v673, %v697
        %v701 = vlaneseq
        %vm702 = vcmp.ge.s32.totalorder %v701, 0
        %vm703 = vcmp.lt.s32.totalorder %v701, 256
        %vm704 = vmand %vm702, %vm703
        %705 = vst.msk [vmem:[%s298] sm:$0x3] %vm704, %v699
        %s706 = sand.u32 %s199, 1
        %s707 = scalar_lea.sflag [#allocation4], %s706
        %s708 = sand.u32 %s199, 1
        %s709 = smul.addr %s708, 2
        %s710 = scalar_lea.vmem [#allocation3], %s709
        // Predicated region
        $region49: #{tpu_custom_call.1} parent=47 // pred_check
          %p711 = pneg %p209
        $region50: #{tpu_custom_call.1} parent=47 // pred_check_branch
          %713 = sbr.rel (%p711) target = $region52
        $region51: #{tpu_custom_call.1} parent=47 // pred_region
          %s714 = smul.u32 2, %s28
          %716 = vsyncadd %s707, 0
          %s717 = smul.addr %s27, 2
          %s718 = sadd.s32 %s714, %s717
          %s719 = scalar_lea.hbm %s7, %s718
          %s721 = sshll.u32 %s710, 4
          %s722 = int_to_ptr.vmem [resolvable:$true] %s721
          %s723 = sshll.u32 %s719, 4
          %s724 = int_to_ptr.hbm [resolvable:$true] %s723
          %726 = dma.vmem_to_hbm [thread:$0]  %s722, 32, %s724, %s707
        $region52: #{tpu_custom_call.1} parent=47 // pred_fallthru
          _
      $region48: #{tpu_custom_call.1} parent=5 // pred_fallthru
        _
      %p727 = scmp.le.s32.totalorder 2, %s18
      // Predicated region
      $region53: #{tpu_custom_call.1} parent=5 // pred_check
        %p728 = pneg %p727
      $region54: #{tpu_custom_call.1} parent=5 // pred_check_branch
        %730 = sbr.rel (%p728) target = $region56
      $region55: #{tpu_custom_call.1} parent=5 // pred_region
        %s731 = ssub.s32 %s18, 2
        // Predicated region
        $region57: #{tpu_custom_call.1} parent=55 // pred_check
          %p732 = pneg %p215
        $region58: #{tpu_custom_call.1} parent=55 // pred_check_branch
          %734 = sbr.rel (%p732) target = $region60
        $region59: #{tpu_custom_call.1} parent=55 // pred_region
          %s735 = sand.u32 %s200, 1
          %s736 = scalar_lea.sflag [#allocation4], %s735
          %s737 = sand.u32 %s200, 1
          %s738 = smul.addr %s737, 2
          %s739 = scalar_lea.vmem [#allocation3], %s738
          %741 = dma.done %s736, 32
        $region60: #{tpu_custom_call.1} parent=55 // pred_fallthru
          _
      $region56: #{tpu_custom_call.1} parent=5 // pred_fallthru
        _
    $region6: #{tpu_custom_call.1} parent=1 // loop_footer
      %s22 = sadd.s32 1, %s18
    $region7: #{tpu_custom_call.1} parent=1 // loop_footer_branch
      %17 = sbr.rel target = $region3
    $region8: #{tpu_custom_call.1} parent=1 // loop_exit
      _
    %742 = vsyncpa [#allocation4], 1
    %s743 = scalar_lea.sflag [#allocation4], 1
    %744 = vsyncpa %s743, 1

</llo_original>
